<compile_context>
chip_gen: v7x
topology: tpu7x:2x2x1
jax: 0.10.0
libtpu: 0.0.40
codegen_flags: <defaults>
</compile_context>

<pallas_src>
import jax
import jax.numpy as jnp
from jax.experimental import pallas as pl
from jax.experimental.pallas import tpu as pltpu


def _round_up(x, m):
    return ((x + m - 1) // m) * m


def _chemprop_init_kernel(nbr_ref, bond_ref, rw_ref, wb_ref, o_ref):
    """One row tile of: ReLU( rW[nbr0]  +  bond_feats @ W_bond )."""
    idx = nbr_ref[...]                                   # (tr, 1) int32
    tr = idx.shape[0]
    n_nodes = rw_ref.shape[0]

    # In-kernel row gather of the VMEM-resident rW via a one-hot matmul.
    # The kernel is HBM-bound at ChemProp sizes, so this extra MXU pass is
    # hidden under the streaming of bond_feats / output.
    # TODO(synk): for very large node counts, switch to jnp.take / DMA gather
    #             (one-hot matmul cost grows with n_nodes).
    node_iota = jax.lax.broadcasted_iota(jnp.int32, (tr, n_nodes), 1)
    onehot = jnp.where(node_iota == idx, 1.0, 0.0).astype(rw_ref.dtype)

    node_part = jnp.dot(onehot, rw_ref[...],
                        preferred_element_type=jnp.float32)
    bond_part = jnp.dot(bond_ref[...], wb_ref[...],
                        preferred_element_type=jnp.float32)
    # ReLU (bias was removed by remove_bias in the PyTorch module).
    o_ref[...] = jnp.maximum(node_part + bond_part, 0.0).astype(o_ref.dtype)


def chemprop_init(r, bond_feats, bond_nbrs, w_node_t, w_bond_t, *,
                  tile_rows=1024, compute_dtype=jnp.bfloat16,
                  out_dtype=jnp.float32):
    """
    Args:
      r:          [n_nodes, node_dim]   node features
      bond_feats: [n_bonds, bond_dim]   bond features
      bond_nbrs:  [n_bonds, 2]          int bonded neighbor list
      w_node_t:   [node_dim, hidden]    transposed no-bias Linear weight (node cols)
      w_bond_t:   [bond_dim, hidden]    transposed no-bias Linear weight (bond cols)
      tile_rows:  row tile size (clamped / padded internally; any n_bonds ok)
      compute_dtype: dtype streamed into the MXU (bf16 default: halves HBM
                     traffic; f32 for exact results). Accumulation is f32.
      out_dtype:  output dtype (f32 default; bf16 halves writeback traffic)
    Returns:
      hidden_feats: [n_bonds, hidden] in out_dtype
    """
    n_bonds = bond_feats.shape[0]
    n_nodes, node_dim = r.shape
    bond_dim = bond_feats.shape[1]
    hidden = w_node_t.shape[1]

    # ---- host-side: tiny per-node matmul rW = r @ W_node (f32), kept small.
    # This is the only place node features / W_node are touched; rW then stays
    # VMEM-resident inside the kernel for the whole grid.
    rw = jnp.dot(r.astype(jnp.float32), w_node_t.astype(jnp.float32),
                 preferred_element_type=jnp.float32)       # [n_nodes, hidden]
    n_nodes_pad = _round_up(n_nodes, 8)
    rw_res = jnp.zeros((n_nodes_pad, hidden), compute_dtype)
    rw_res = rw_res.at[:n_nodes, :].set(rw.astype(compute_dtype))
    wb = w_bond_t.astype(compute_dtype)                    # [bond_dim, hidden]

    # ---- row tiling (no K/hidden padding in HBM; only row padding) ----
    n_bonds8 = _round_up(max(n_bonds, 1), 8)
    tr = max(8, min(_round_up(tile_rows, 8), n_bonds8))
    # v7x megacore: make sure there are >= 2 row tiles when there is enough
    # work, so dimension_semantics=("parallel",) can use both TensorCores.
    if n_bonds >= 512 and (n_bonds8 // tr) < 2:
        tr = _round_up(pl.cdiv(n_bonds8, 2), 8)
    rows_pad = _round_up(n_bonds8, tr)
    grid = (rows_pad // tr,)

    nbr0 = bond_nbrs[:, 0].astype(jnp.int32)
    idx2d = jnp.zeros((rows_pad, 1), jnp.int32).at[:n_bonds, 0].set(nbr0)
    bf = jnp.zeros((rows_pad, bond_dim), compute_dtype)
    bf = bf.at[:n_bonds, :].set(bond_feats.astype(compute_dtype))

    # ---- explicit VMEM budget (matters on v7x: 64 MiB phys / 32 MiB scoped) ----
    cb = jnp.dtype(compute_dtype).itemsize
    ob = jnp.dtype(out_dtype).itemsize
    resident = (n_nodes_pad * hidden + bond_dim * hidden) * cb
    per_step = tr * (4 + bond_dim * cb + hidden * ob)       # idx + bond + out
    scratchish = tr * (n_nodes_pad + hidden) * 4            # one-hot + f32 acc
    need = 2 * resident + 2 * per_step + scratchish         # double-buffered
    vmem_limit = int(min(max(2 * need, 32 * 1024 * 1024), 56 * 1024 * 1024))
    # NOTE: the constant-index rW / W_bond blocks could additionally be marked
    # pipeline_mode=pl.Buffered(1) to drop their second buffer on v7x.

    out = pl.pallas_call(
        _chemprop_init_kernel,
        out_shape=jax.ShapeDtypeStruct((rows_pad, hidden), out_dtype),
        grid_spec=pltpu.PrefetchScalarGridSpec(
            num_scalar_prefetch=0,
            grid=grid,
            in_specs=[
                # Per-tile int32 source-node index column.
                pl.BlockSpec((tr, 1), lambda i: (i, 0)),
                # Per-tile bond features, natural (unpadded) last dim.
                pl.BlockSpec((tr, bond_dim), lambda i: (i, 0)),
                # VMEM-resident rW (constant index map -> no re-DMA).
                pl.BlockSpec((n_nodes_pad, hidden), lambda i: (0, 0)),
                # VMEM-resident bond weight block.
                pl.BlockSpec((bond_dim, hidden), lambda i: (0, 0)),
            ],
            out_specs=pl.BlockSpec((tr, hidden), lambda i: (i, 0)),
        ),
        compiler_params=pltpu.CompilerParams(
            dimension_semantics=("parallel",),
            vmem_limit_bytes=vmem_limit),
    )(idx2d, bf, rw_res, wb)

    # Only the cheap contiguous row slice remains (no column slice copy).
    if rows_pad == n_bonds:
        return out
    return out[:n_bonds]


def reference(r, bond_feats, bond_nbrs, w_node_t, w_bond_t):
    cat = jnp.concatenate([r[bond_nbrs[:, 0]], bond_feats], axis=1)
    w_t = jnp.concatenate([w_node_t, w_bond_t], axis=0)   # [node+bond, hidden]
    return jnp.maximum(cat @ w_t, 0.0)


if __name__ == "__main__":
    key = jax.random.PRNGKey(0)
    k_r, k_b, k_wn, k_wb, k_idx = jax.random.split(key, 5)

    # --- Small, ChemProp-like shapes (primary demo) ---
    n_nodes, n_bonds = 12, 16
    node_dim, bond_dim, hidden = 32, 16, 32

    r = jax.random.normal(k_r, (n_nodes, node_dim), dtype=jnp.float32)
    bond_feats = jax.random.normal(k_b, (n_bonds, bond_dim), dtype=jnp.float32)
    bond_nbrs = jax.random.randint(k_idx, (n_bonds, 2), 0, n_nodes,
                                   dtype=jnp.int32)
    # Deterministic no-bias Linear weights, stored transposed ([in, out]),
    # split into the node-feature and bond-feature column blocks.
    w_node_t = 0.1 * jax.random.normal(k_wn, (node_dim, hidden),
                                       dtype=jnp.float32)
    w_bond_t = 0.1 * jax.random.normal(k_wb, (bond_dim, hidden),
                                       dtype=jnp.float32)

    ref = reference(r, bond_feats, bond_nbrs, w_node_t, w_bond_t)

    # Default path: bf16 streaming, f32 accumulation, f32 output.
    out = chemprop_init(r, bond_feats, bond_nbrs, w_node_t, w_bond_t)
    out = jax.block_until_ready(out)
    assert out.shape == (n_bonds, hidden)
    assert jnp.allclose(out, ref, atol=5e-2, rtol=5e-2)

    # Exact path: f32 streaming (matches PyTorch up to GEMM-order rounding).
    out_f32 = chemprop_init(r, bond_feats, bond_nbrs, w_node_t, w_bond_t,
                            compute_dtype=jnp.float32)
    out_f32 = jax.block_until_ready(out_f32)
    assert jnp.allclose(out_f32, ref, atol=2e-5, rtol=2e-5)

    # bf16 output path (halves writeback traffic if downstream tolerates it).
    out_bf16 = chemprop_init(r, bond_feats, bond_nbrs, w_node_t, w_bond_t,
                             out_dtype=jnp.bfloat16)
    out_bf16 = jax.block_until_ready(out_bf16)
    assert out_bf16.dtype == jnp.bfloat16
    assert jnp.allclose(out_bf16.astype(jnp.float32), ref, atol=1e-1, rtol=1e-1)

    # --- Larger, non-divisible shapes: exercises row padding, the >=2-tile
    #     clamp, unpadded K/hidden (K=147, hidden=300) and multi-tile grids. ---
    k2 = jax.random.PRNGKey(1)
    k_r2, k_b2, k_wn2, k_wb2, k_idx2 = jax.random.split(k2, 5)
    n_nodes2, n_bonds2 = 57, 1000
    node_dim2, bond_dim2, hidden2 = 133, 14, 300

    r2 = jax.random.normal(k_r2, (n_nodes2, node_dim2), dtype=jnp.float32)
    bf2 = jax.random.normal(k_b2, (n_bonds2, bond_dim2), dtype=jnp.float32)
    nbrs2 = jax.random.randint(k_idx2, (n_bonds2, 2), 0, n_nodes2,
                               dtype=jnp.int32)
    wn2 = 0.1 * jax.random.normal(k_wn2, (node_dim2, hidden2), dtype=jnp.float32)
    wb2 = 0.1 * jax.random.normal(k_wb2, (bond_dim2, hidden2), dtype=jnp.float32)

    ref2 = reference(r2, bf2, nbrs2, wn2, wb2)

    # Default (bf16 streaming) with the automatic >=2-tile row split.
    out2 = chemprop_init(r2, bf2, nbrs2, wn2, wb2)
    out2 = jax.block_until_ready(out2)
    assert out2.shape == (n_bonds2, hidden2)
    assert jnp.allclose(out2, ref2, atol=5e-2, rtol=5e-2)

    # Exact f32 path with an explicit smaller row tile (4-tile grid).
    out2_f32 = chemprop_init(r2, bf2, nbrs2, wn2, wb2,
                             tile_rows=256, compute_dtype=jnp.float32)
    out2_f32 = jax.block_until_ready(out2_f32)
    assert jnp.allclose(out2_f32, ref2, atol=1e-4, rtol=1e-4)

    # TODO(synk): construct_sequential supports arbitrary layer stacks
    # (e.g. LeakyReLU, multiple Linears); here the canonical ChemProp input
    # layer (single no-bias Linear + ReLU) is implemented.
    print("KERNEL_OK")
</pallas_src>

<mosaic_0001>
module attributes {stable_mosaic.version = 11 : i64} {
  func.func @_chemprop_init_kernel(%arg0: i32, %arg1: memref<16x1xi32, #tpu.memory_space<vmem>>, %arg2: memref<16x16xbf16, #tpu.memory_space<vmem>>, %arg3: memref<16x32xbf16, #tpu.memory_space<vmem>>, %arg4: memref<16x32xbf16, #tpu.memory_space<vmem>>, %arg5: memref<16x32xf32, #tpu.memory_space<vmem>>) attributes {dimension_semantics = [#tpu.dimension_semantics<parallel>], iteration_bounds = array<i64: 1>, scalar_prefetch = 0 : i64, scratch_operands = 0 : i64, tpu.core_type = #tpu.core_type<tc>, window_params = [{transform_indices = @transform_0, window_bounds = array<i64: 16, 1>}, {transform_indices = @transform_1, window_bounds = array<i64: 16, 16>}, {pipeline_mode = #tpu.pipeline_mode<synchronous>, transform_indices = @transform_2, window_bounds = array<i64: 16, 32>}, {pipeline_mode = #tpu.pipeline_mode<synchronous>, transform_indices = @transform_3, window_bounds = array<i64: 16, 32>}, {transform_indices = @transform_4, window_bounds = array<i64: 16, 32>}]} {
    %c0 = arith.constant 0 : index
    %c0_0 = arith.constant 0 : index
    %0 = vector.load %arg1[%c0, %c0_0] : memref<16x1xi32, #tpu.memory_space<vmem>>, vector<16x1xi32>
    %1 = tpu.iota {dimensions = array<i32: 1>} : vector<16x16xi32>
    %2 = vector.broadcast %0 : vector<16x1xi32> to vector<16x16xi32>
    %3 = arith.cmpi eq, %1, %2 : vector<16x16xi32>
    %cst = arith.constant 1.000000e+00 : f32
    %cst_1 = arith.constant 0.000000e+00 : f32
    %4 = vector.broadcast %cst : f32 to vector<16x16xf32>
    %5 = vector.broadcast %cst_1 : f32 to vector<16x16xf32>
    %6 = arith.select %3, %4, %5 : vector<16x16xi1>, vector<16x16xf32>
    %7 = arith.truncf %6 : vector<16x16xf32> to vector<16x16xbf16>
    %c0_2 = arith.constant 0 : index
    %c0_3 = arith.constant 0 : index
    %8 = vector.load %arg3[%c0_2, %c0_3] : memref<16x32xbf16, #tpu.memory_space<vmem>>, vector<16x32xbf16>
    %cst_4 = arith.constant dense<0.000000e+00> : vector<16x32xf32>
    %9 = tpu.matmul %7, %8, %cst_4 {dimension_numbers = #tpu.dot_dimension_numbers<[1], [0], [0], [1], [0, 0, 1, 1], [], []>} : vector<16x16xbf16>, vector<16x32xbf16>, vector<16x32xf32> -> vector<16x32xf32>
    %c0_5 = arith.constant 0 : index
    %c0_6 = arith.constant 0 : index
    %10 = vector.load %arg2[%c0_5, %c0_6] : memref<16x16xbf16, #tpu.memory_space<vmem>>, vector<16x16xbf16>
    %c0_7 = arith.constant 0 : index
    %c0_8 = arith.constant 0 : index
    %11 = vector.load %arg4[%c0_7, %c0_8] : memref<16x32xbf16, #tpu.memory_space<vmem>>, vector<16x32xbf16>
    %cst_9 = arith.constant dense<0.000000e+00> : vector<16x32xf32>
    %12 = tpu.matmul %10, %11, %cst_9 {dimension_numbers = #tpu.dot_dimension_numbers<[1], [0], [0], [1], [0, 0, 1, 1], [], []>} : vector<16x16xbf16>, vector<16x32xbf16>, vector<16x32xf32> -> vector<16x32xf32>
    %13 = arith.addf %9, %12 : vector<16x32xf32>
    %cst_10 = arith.constant 0.000000e+00 : f32
    %14 = vector.broadcast %cst_10 : f32 to vector<16x32xf32>
    %15 = arith.maximumf %13, %14 : vector<16x32xf32>
    %c0_11 = arith.constant 0 : index
    %c0_12 = arith.constant 0 : index
    %16 = vector.load %arg5[%c0_11, %c0_12] : memref<16x32xf32, #tpu.memory_space<vmem>>, vector<16x32xf32>
    tpu.vector_store %arg5[%c0_11, %c0_12], %15 {strides = array<i32>} : memref<16x32xf32, #tpu.memory_space<vmem>>, vector<16x32xf32>,
    return
  }
  func.func @transform_0(%arg0: i32) -> (i32, i32) {
    %c0_i32 = arith.constant 0 : i32
    %c0_i32_0 = arith.constant 0 : i32
    return %arg0, %c0_i32 : i32, i32
  }
  func.func @transform_1(%arg0: i32) -> (i32, i32) {
    %c0_i32 = arith.constant 0 : i32
    %c0_i32_0 = arith.constant 0 : i32
    return %arg0, %c0_i32 : i32, i32
  }
  func.func @transform_2(%arg0: i32) -> (i32, i32) {
    %c0_i32 = arith.constant 0 : i32
    %c0_i32_0 = arith.constant 0 : i32
    %c0_i32_1 = arith.constant 0 : i32
    return %c0_i32, %c0_i32_0 : i32, i32
  }
  func.func @transform_3(%arg0: i32) -> (i32, i32) {
    %c0_i32 = arith.constant 0 : i32
    %c0_i32_0 = arith.constant 0 : i32
    %c0_i32_1 = arith.constant 0 : i32
    return %c0_i32, %c0_i32_0 : i32, i32
  }
  func.func @transform_4(%arg0: i32) -> (i32, i32) {
    %c0_i32 = arith.constant 0 : i32
    %c0_i32_0 = arith.constant 0 : i32
    return %arg0, %c0_i32 : i32, i32
  }
}

</mosaic_0001>

<llo_original>
// kernel: tpu_custom_call.1
$region0: #{tpu_custom_call.1}
  #allocation0 [shape = 'u32[]', space=smem, size = 0x4, offset = 0x4, fixed_abs, tag = 'smem constant byte address 0x4 - core index']
  #allocation1 [shape = 'u32[144,128]{1,0:T(1,128)}', space=vmem, size = 0x12000, scoped, tag = 'internal scratch']
  %s0 = inlined_call_operand.vmem [shape: s32[16,1], index: 0, kind: input, shape index: {}]
  %s1 = inlined_call_operand.vmem [shape: bf16[16,16], index: 1, kind: input, shape index: {}]
  %s2 = inlined_call_operand.vmem [shape: bf16[16,32], index: 2, kind: input, shape index: {}]
  %s3 = inlined_call_operand.vmem [shape: bf16[16,32], index: 3, kind: input, shape index: {}]
  %s4 = inlined_call_operand.hbm [shape: f32[16,32], index: 4, kind: output, shape index: {}]
  %s5 = sld [smem:[#allocation0]]
  $region26: #{tpu_custom_call.1} parent=0
    _
  %s7 = ssub.s32 1, %s5
  %s8 = scalar_select 0, %s7, %s5
  $region1: #{tpu_custom_call.1} parent=0
    #allocation2 [shape = 'u8[8192]{0}', space=vmem, size = 0x2000, scoped, tag = 'output window, operand 0, single buffered']
    #allocation3 [shape = 's32[1]{0}', space=sflag, size = 0x4, scoped, tag = 'scoped memory for tpu_custom_call.1']
    %9 = vsyncpa [#allocation3], 0
    // Predicated region
    $region2: #{tpu_custom_call.1} parent=1 // pred_check
      _
    $region3: #{tpu_custom_call.1} parent=1 // pred_check_branch
      %11 = sbr.rel (0) target = $region5
    $region4: #{tpu_custom_call.1} parent=1 // pred_region
      _
    $region5: #{tpu_custom_call.1} parent=1 // pred_fallthru
      _
    // Predicated region
    $region6: #{tpu_custom_call.1} parent=1 // pred_check
      _
    $region7: #{tpu_custom_call.1} parent=1 // pred_check_branch
      %13 = sbr.rel (0) target = $region9
    $region8: #{tpu_custom_call.1} parent=1 // pred_region
      _
    $region9: #{tpu_custom_call.1} parent=1 // pred_fallthru
      _
    // Predicated region
    $region10: #{tpu_custom_call.1} parent=1 // pred_check
      _
    $region11: #{tpu_custom_call.1} parent=1 // pred_check_branch
      %15 = sbr.rel (0) target = $region13
    $region12: #{tpu_custom_call.1} parent=1 // pred_region
      _
    $region13: #{tpu_custom_call.1} parent=1 // pred_fallthru
      _
    // Predicated region
    $region14: #{tpu_custom_call.1} parent=1 // pred_check
      _
    $region15: #{tpu_custom_call.1} parent=1 // pred_check_branch
      %17 = sbr.rel (0) target = $region17
    $region16: #{tpu_custom_call.1} parent=1 // pred_region
      _
    $region17: #{tpu_custom_call.1} parent=1 // pred_fallthru
      _
    %v19 = vld [vmem:[%s0] sm:$0xff]
    %v20 = vld [vmem:[%s0 + $0x8] sm:$0xff]
    %v21 = vlaneseq
    %v22 = vand.u32 %v21, 127
    %23 = vset.pattern.permute.xlu0 0
    %24 = vperm.xlu0 %23, %v19
    %v25 = vpop.permute.xlu0 %24
    %26 = vset.pattern.permute.xlu0 0
    %27 = vperm.xlu0 %26, %v20
    %v28 = vpop.permute.xlu0 %27
    %vm29 = vcmp.eq.s32.totalorder %v22, %v25
    %vm30 = vcmp.eq.s32.totalorder %v22, %v28
    %v31 = vsel %vm29, 1.0, 0.0
    %v32 = vsel %vm30, 1.0, 0.0
    %v33 = vpack.c.bf16 %v32, %v31
    %v34 = vld [vmem:[%s2] sm:$0xf]
    %v35 = vld [vmem:[%s2 + $0x4] sm:$0xf]
    %v36 = vld [vmem:[%s1] sm:$0xf]
    %v37 = vld [vmem:[%s1 + $0x4] sm:$0xf]
    %v38 = vld [vmem:[%s3] sm:$0xf]
    %v39 = vld [vmem:[%s3 + $0x4] sm:$0xf]
    %v42 = vunpack.c.l.b16 %v36
    %v43 = vunpack.c.l.b16 %v37
    %v44 = vpack.c.b16 %v43, %v42
    %v47 = vunpack.c.l.b16 %v38
    %v48 = vunpack.c.l.b16 %v39
    %v49 = vpack.c.b16 %v48, %v47
    %vm51 = vcmask 130048
    %v53 = vsel %vm51, %v44, 0
    %55 = vmatprep.subr.bf16.mxu0 0
    %56 = vmatpush1.bf16.msra.mxu0 %v49
    %57 = vmatprep.subr.bf16.mxu0 0
    %58 = vmatpush1.bf16.msra.mxu0 0
    %59 = vmatprep.subr.bf16.mxu0 0
    %60 = vmatpush1.bf16.msra.mxu0 0
    %61 = vmatprep.subr.bf16.mxu0 0
    %62 = vmatpush1.bf16.msra.mxu0 0
    %63 = vmatprep.subr.bf16.mxu0 0
    %64 = vmatpush1.bf16.msra.mxu0 0
    %65 = vmatprep.subr.bf16.mxu0 0
    %66 = vmatpush1.bf16.msra.mxu0 0
    %67 = vmatprep.subr.bf16.mxu0 0
    %68 = vmatpush1.bf16.msra.mxu0 0
    %69 = vmatprep.subr.bf16.mxu0 0
    %70 = vmatpush1.bf16.msra.mxu0 0
    %71 = vmatprep.subr.bf16.mxu0 0
    %72 = vmatpush1.bf16.msra.mxu0 0
    %73 = vmatprep.subr.bf16.mxu0 0
    %74 = vmatpush1.bf16.msra.mxu0 0
    %75 = vmatprep.subr.bf16.mxu0 0
    %76 = vmatpush1.bf16.msra.mxu0 0
    %77 = vmatprep.subr.bf16.mxu0 0
    %78 = vmatpush1.bf16.msra.mxu0 0
    %79 = vmatprep.subr.bf16.mxu0 0
    %80 = vmatpush1.bf16.msra.mxu0 0
    %81 = vmatprep.subr.bf16.mxu0 0
    %82 = vmatpush1.bf16.msra.mxu0 0
    %83 = vmatprep.subr.bf16.mxu0 0
    %84 = vmatpush1.bf16.msra.mxu0 0
    %85 = vmatprep.subr.bf16.mxu0 0
    %86 = vmatpush1.bf16.msra.mxu0 0
    %87 = vmatprep.mubr.bf16.mxu0 0
    %88 = vmatmul.mubr.bf16.gmra.mrb[0].mxu0 %v53
    %v89 = vpop.f32.mrb[0].mxu0
    %v90 = vadd.f32 0.0, %v89
    %v91 = vpop.f32.mrb[0].mxu0
    %v92 = vpop.f32.mrb[0].mxu0
    %v93 = vadd.f32 0.0, %v92
    %v94 = vpop.f32.mrb[0].mxu0
    %95 = vdwg.mxu0
    %v98 = vunpack.c.l.b16 %v34
    %v99 = vunpack.c.l.b16 %v35
    %v100 = vpack.c.b16 %v99, %v98
    %v103 = vsel %vm51, %v33, 0
    %105 = vmatprep.subr.bf16.mxu0 0
    %106 = vmatpush1.bf16.msra.mxu0 %v100
    %107 = vmatprep.subr.bf16.mxu0 0
    %108 = vmatpush1.bf16.msra.mxu0 0
    %109 = vmatprep.subr.bf16.mxu0 0
    %110 = vmatpush1.bf16.msra.mxu0 0
    %111 = vmatprep.subr.bf16.mxu0 0
    %112 = vmatpush1.bf16.msra.mxu0 0
    %113 = vmatprep.subr.bf16.mxu0 0
    %114 = vmatpush1.bf16.msra.mxu0 0
    %115 = vmatprep.subr.bf16.mxu0 0
    %116 = vmatpush1.bf16.msra.mxu0 0
    %117 = vmatprep.subr.bf16.mxu0 0
    %118 = vmatpush1.bf16.msra.mxu0 0
    %119 = vmatprep.subr.bf16.mxu0 0
    %120 = vmatpush1.bf16.msra.mxu0 0
    %121 = vmatprep.subr.bf16.mxu0 0
    %122 = vmatpush1.bf16.msra.mxu0 0
    %123 = vmatprep.subr.bf16.mxu0 0
    %124 = vmatpush1.bf16.msra.mxu0 0
    %125 = vmatprep.subr.bf16.mxu0 0
    %126 = vmatpush1.bf16.msra.mxu0 0
    %127 = vmatprep.subr.bf16.mxu0 0
    %128 = vmatpush1.bf16.msra.mxu0 0
    %129 = vmatprep.subr.bf16.mxu0 0
    %130 = vmatpush1.bf16.msra.mxu0 0
    %131 = vmatprep.subr.bf16.mxu0 0
    %132 = vmatpush1.bf16.msra.mxu0 0
    %133 = vmatprep.subr.bf16.mxu0 0
    %134 = vmatpush1.bf16.msra.mxu0 0
    %135 = vmatprep.subr.bf16.mxu0 0
    %136 = vmatpush1.bf16.msra.mxu0 0
    %137 = vmatprep.mubr.bf16.mxu0 0
    %138 = vmatmul.mubr.bf16.gmra.mrb[0].mxu0 %v103
    %v139 = vpop.f32.mrb[0].mxu0
    %v140 = vadd.f32 %v90, %v139
    %v141 = vpop.f32.mrb[0].mxu0
    %v142 = vpop.f32.mrb[0].mxu0
    %v143 = vadd.f32 %v93, %v142
    %v144 = vpop.f32.mrb[0].mxu0
    %145 = vdwg.mxu0
    %v146 = vmax.f32 %v140, 0.0
    %v147 = vmax.f32 %v143, 0.0
    %vm148 = vcmask 261120
    %149 = vst.msk [vmem:[#allocation2] sm:$0xff] %vm148, %v146
    %150 = vst.msk [vmem:[#allocation2 + $0x8] sm:$0xff] %vm148, %v147
    // Predicated region
    $region18: #{tpu_custom_call.1} parent=1 // pred_check
      _
    $region19: #{tpu_custom_call.1} parent=1 // pred_check_branch
      %152 = sbr.rel (0) target = $region21
    $region20: #{tpu_custom_call.1} parent=1 // pred_region
      %s154 = ssub.s32 256, 256
      %155 = vsyncadd [#allocation3], %s154
      %s156 = sshll.u32 [#allocation2], 4
      %s157 = int_to_ptr.vmem [resolvable:$true] %s156
      %162 = dma.vmem_to_hbm [thread:$0]  %s157, 256, %s4, [#allocation3], 128, 128, 8
    $region21: #{tpu_custom_call.1} parent=1 // pred_fallthru
      _
    // Predicated region
    $region22: #{tpu_custom_call.1} parent=1 // pred_check
      _
    $region23: #{tpu_custom_call.1} parent=1 // pred_check_branch
      %164 = sbr.rel (0) target = $region25
    $region24: #{tpu_custom_call.1} parent=1 // pred_region
      %165 = dma.done [#allocation3], 256
    $region25: #{tpu_custom_call.1} parent=1 // pred_fallthru
      _
    %166 = vsyncpa [#allocation3], 1

</llo_original>
